<compile_context>
chip_gen: v6e
topology: v6e:2x2x1
jax: 0.10.0
libtpu: 0.0.40
codegen_flags: <defaults>
</compile_context>

<pallas_src>
import jax
import jax.numpy as jnp
from jax.experimental import pallas as pl
from jax.experimental.pallas import tpu as pltpu


_HALO = 16          # sublane-aligned halo rows (bf16 tile = 16); supports k <= 33
_TT_TARGET = 512    # output-time rows per grid step (~85% of HBM roofline)


def _round_up(x, m):
    return (x + m - 1) // m * m


def _conv_glu_kernel(xe_ref, xeh_ref, xo_ref, xoh_ref, w_ref, b_ref, o_ref):
    """Fused stride-2 Conv1d (sum of per-tap matmuls) + bias + GLU.

    xe_ref / xo_ref   : (1, TT, C_in)    even / odd time phase, main window (bf16)
    xeh_ref / xoh_ref : (1, HALO, C_in)  halo rows following the main window (bf16)
    w_ref             : (k, C_in, 2N)    per-tap weights, [value | gate] (bf16)
    b_ref             : (1, 2N)          bias, [value | gate] (f32)
    o_ref             : (1, TT, N)       GLU output tile
    """
    tt = o_ref.shape[1]
    n = o_ref.shape[2]
    k = w_ref.shape[0]

    mains = (xe_ref, xo_ref)
    halos = (xeh_ref, xoh_ref)

    # Combined (main ++ halo) windows are built lazily, only for phases that
    # actually have a tap with a nonzero row offset (for k == 3 that is only
    # the even phase), so most taps read the input refs directly with no copy.
    wins = {}

    def tap_rows(phase, off):
        if off == 0:
            return mains[phase][0]                                # no VMEM copy
        if phase not in wins:
            wins[phase] = jnp.concatenate(
                [mains[phase][0], halos[phase][0]], axis=0)       # (TT+HALO, C_in)
        return wins[phase][off:off + tt]                          # (TT, C_in)

    # Single fused accumulator for value+gate halves, initialised with the
    # broadcast bias (saves a separate (TT, 2N) add pass).
    acc = None
    for j in range(k):                     # static python loop, k is small
        tap = tap_rows(j % 2, j // 2)
        d = jnp.dot(tap, w_ref[j], preferred_element_type=jnp.float32)
        acc = (d + b_ref[...]) if acc is None else (acc + d)

    a = acc[:, :n]                         # lane slice at 128-aligned boundary
    g = acc[:, n:]
    o_ref[0] = (a * jax.nn.sigmoid(g)).astype(o_ref.dtype)


def conv1d_glu_pallas(x, weight, bias, *, stride=2, out_dtype=None):
    """One stride-2 Conv1d(padding=k//2) followed by GLU(dim=channel).

    x      : (B, T, C_in_x)  -- C_in_x may exceed the weight's C_in (the extra
                                channels must be zero; the weight is zero-padded)
    weight : (2*C_out, C_in_w, k)   torch Conv1d layout, C_in_w <= C_in_x
    bias   : (2*C_out,)
    returns: (B, T_out, N) with N = round_up(C_out, 128); channels >= C_out are 0.
    """
    assert stride == 2
    B, T, C_in_x = x.shape
    C2, C_in_w, k = weight.shape
    assert C_in_w <= C_in_x and k <= 2 * _HALO + 1
    C_half = C2 // 2
    pad = k // 2
    if out_dtype is None:
        out_dtype = x.dtype

    T_out = (T + 2 * pad - k) // stride + 1

    # ---- output-time tiling (16-aligned, target _TT_TARGET rows/step) ------
    target = _TT_TARGET
    if B == 1 and T_out > 16:              # keep >= 2 grid steps for 2-TC chips
        target = min(target, _round_up(pl.cdiv(T_out, 2), 16))
    num_t = pl.cdiv(T_out, target)
    TT = _round_up(pl.cdiv(T_out, num_t), 16)
    num_t = pl.cdiv(T_out, TT)
    T_out_pad = num_t * TT

    # ---- even/odd phase split (bf16, no im2col duplication in HBM) ---------
    len_eo = T_out_pad + _HALO             # main windows + one halo block
    T_total = 2 * len_eo
    x_pad = jnp.pad(x.astype(jnp.bfloat16),
                    ((0, 0), (pad, T_total - T - pad), (0, 0)))
    x_even = x_pad[:, 0::2, :]             # (B, len_eo, C_in_x) = x_pad[2m]
    x_odd = x_pad[:, 1::2, :]              # (B, len_eo, C_in_x) = x_pad[2m+1]

    # ---- fused per-tap weight: (k, C_in_x, 2N) = [value | gate] ------------
    N = _round_up(C_half, 128)
    pad_ci = C_in_x - C_in_w
    w = jnp.transpose(weight, (2, 1, 0)).astype(jnp.bfloat16)   # (k, C_in_w, 2*C_half)
    w_a = jnp.pad(w[:, :, :C_half], ((0, 0), (0, pad_ci), (0, N - C_half)))
    w_g = jnp.pad(w[:, :, C_half:], ((0, 0), (0, pad_ci), (0, N - C_half)))
    w_full = jnp.concatenate([w_a, w_g], axis=-1)               # (k, C_in_x, 2N)
    b_full = jnp.concatenate(
        [jnp.pad(bias[:C_half], (0, N - C_half)),
         jnp.pad(bias[C_half:], (0, N - C_half))]
    ).reshape(1, 2 * N).astype(jnp.float32)

    halo_blk = TT // _HALO                 # halo block stride (TT % 16 == 0)
    out_bytes = jnp.dtype(out_dtype).itemsize

    # resident blocks (constant index_map): single-buffer them to save VMEM
    resident = dict(pipeline_mode=pl.Buffered(1))

    # rough per-step VMEM budget -> explicit limit with headroom (v7x: 64 MiB phys)
    in_buf = 2 * (TT + _HALO) * C_in_x * 2             # even+odd windows (bf16)
    vmem_est = (2 * in_buf                             # double-buffered inputs
                + w_full.size * 2 + b_full.size * 4    # resident weights/bias
                + 2 * TT * N * out_bytes               # double-buffered output
                + TT * 2 * N * 4                       # f32 accumulator
                + (TT + _HALO) * C_in_x * 2 * 2)       # window/slice temporaries
    vmem_limit = int(min(max(2 * vmem_est, 16 << 20), 48 << 20))

    cost = pl.CostEstimate(
        flops=2 * B * T_out_pad * k * C_in_x * 2 * N,
        transcendentals=B * T_out_pad * N,
        bytes_accessed=(x_even.size + x_odd.size) * 2
        + w_full.size * 2 + b_full.size * 4
        + B * T_out_pad * N * out_bytes,
    )

    out = pl.pallas_call(
        _conv_glu_kernel,
        out_shape=jax.ShapeDtypeStruct((B, T_out_pad, N), out_dtype),
        grid=(B, num_t),
        in_specs=[
            pl.BlockSpec((1, TT, C_in_x), lambda b, t: (b, t, 0)),            # even main
            pl.BlockSpec((1, _HALO, C_in_x),
                         lambda b, t: (b, (t + 1) * halo_blk, 0)),            # even halo
            pl.BlockSpec((1, TT, C_in_x), lambda b, t: (b, t, 0)),            # odd main
            pl.BlockSpec((1, _HALO, C_in_x),
                         lambda b, t: (b, (t + 1) * halo_blk, 0)),            # odd halo
            pl.BlockSpec((k, C_in_x, 2 * N), lambda b, t: (0, 0, 0), **resident),
            pl.BlockSpec((1, 2 * N), lambda b, t: (0, 0), **resident),
        ],
        out_specs=pl.BlockSpec((1, TT, N), lambda b, t: (b, t, 0)),
        compiler_params=pltpu.CompilerParams(
            dimension_semantics=("parallel", "parallel"),
            vmem_limit_bytes=vmem_limit),
        cost_estimate=cost,
    )(x_even, x_even, x_odd, x_odd, w_full, b_full)

    # Keep the 128-padded channel dim for the next layer (padded channels are
    # exactly zero). Padded *time* rows carry bias-derived values, so they are
    # stripped here before the next layer consumes the activation.
    return out[:, :T_out, :]


class Conv1dSubsamplerPallas:
    """JAX/Pallas port of fairseq Conv1dSubsampler."""

    def __init__(self, in_channels, mid_channels, out_channels,
                 kernel_sizes=(3, 3), key=jax.random.PRNGKey(0)):
        self.n_layers = len(kernel_sizes)
        self.kernel_sizes = tuple(kernel_sizes)
        self.out_channels = out_channels
        self.params = []
        for i, k in enumerate(kernel_sizes):
            cin = in_channels if i == 0 else mid_channels // 2
            cout2 = mid_channels if i < self.n_layers - 1 else out_channels * 2
            key, wk, bk = jax.random.split(key, 3)
            bound = 1.0 / (cin * k) ** 0.5
            w = jax.random.uniform(wk, (cout2, cin, k), jnp.float32, -bound, bound)
            b = jax.random.uniform(bk, (cout2,), jnp.float32, -bound, bound)
            self.params.append((w, b))

    def get_out_seq_lens(self, in_seq_lens):
        out = in_seq_lens
        for _ in range(self.n_layers):
            out = jnp.floor((out.astype(jnp.float32) - 1.0) / 2.0 + 1.0).astype(jnp.int32)
        return out

    def __call__(self, src_tokens, src_lengths):
        # src_tokens: (B, T, C_in)  -- matches torch forward's (bsz, in_seq_len, C)
        x = src_tokens
        for i, (w, b) in enumerate(self.params):
            last = (i == self.n_layers - 1)
            # intermediate activations bf16 (halves inter-layer HBM traffic);
            # the channel dim stays 128-padded across layers (lane-dense LHS);
            # final layer emits the caller's dtype (f32).
            layer_dtype = src_tokens.dtype if last else jnp.bfloat16
            x = conv1d_glu_pallas(x, w, b, stride=2, out_dtype=layer_dtype)
        x = x[:, :, :self.out_channels]      # strip channel padding once, at the end
        return x, self.get_out_seq_lens(src_lengths)


def _reference_forward(model, src_tokens, src_lengths):
    """Pure-JAX f32 reference (lax.conv) for a correctness sanity check."""
    x = jnp.transpose(src_tokens, (0, 2, 1))  # (B, C, T)
    for (w, b) in model.params:
        k = w.shape[-1]
        y = jax.lax.conv_general_dilated(
            x, w, window_strides=(2,), padding=[(k // 2, k // 2)],
            dimension_numbers=("NCH", "OIH", "NCH"))
        y = y + b[None, :, None]
        c = y.shape[1] // 2
        x = y[:, :c, :] * jax.nn.sigmoid(y[:, c:, :])
    x = jnp.transpose(x, (0, 2, 1))
    return x, model.get_out_seq_lens(src_lengths)


if __name__ == "__main__":
    key = jax.random.PRNGKey(0)
    B, T, C_in = 2, 16, 16
    mid_channels, out_channels = 32, 16

    key, xk = jax.random.split(key)
    src_tokens = jax.random.normal(xk, (B, T, C_in), jnp.float32)
    src_lengths = jnp.array([16, 12], jnp.int32)

    model = Conv1dSubsamplerPallas(C_in, mid_channels, out_channels,
                                   kernel_sizes=(3, 3),
                                   key=jax.random.PRNGKey(0))

    out, out_lens = model(src_tokens, src_lengths)
    out = jax.block_until_ready(out)
    out_lens = jax.block_until_ready(out_lens)

    # sanity check vs pure-JAX f32 reference (kernel uses bf16 operands,
    # f32 accumulation -> loosened tolerance).
    ref_out, ref_lens = _reference_forward(model, src_tokens, src_lengths)
    assert out.shape == (B, 4, out_channels), out.shape
    max_err = float(jnp.max(jnp.abs(out - ref_out)))
    assert jnp.allclose(out, ref_out, atol=2e-2, rtol=2e-2), max_err
    assert jnp.array_equal(out_lens, ref_lens)

    print("KERNEL_OK")
</pallas_src>

<mosaic_0001>
module attributes {stable_mosaic.version = 11 : i64} {
  func.func @_conv_glu_kernel(%arg0: i32, %arg1: i32, %arg2: memref<1x16x16xbf16, #tpu.memory_space<vmem>>, %arg3: memref<1x16x16xbf16, #tpu.memory_space<vmem>>, %arg4: memref<1x16x16xbf16, #tpu.memory_space<vmem>>, %arg5: memref<1x16x16xbf16, #tpu.memory_space<vmem>>, %arg6: memref<3x16x256xbf16, #tpu.memory_space<vmem>>, %arg7: memref<1x256xf32, #tpu.memory_space<vmem>>, %arg8: memref<1x16x128xbf16, #tpu.memory_space<vmem>>) attributes {dimension_semantics = [#tpu.dimension_semantics<parallel>, #tpu.dimension_semantics<parallel>], iteration_bounds = array<i64: 2, 1>, scalar_prefetch = 0 : i64, scratch_operands = 0 : i64, tpu.core_type = #tpu.core_type<tc>, window_params = [{transform_indices = @transform_0, window_bounds = array<i64: 1, 16, 16>}, {transform_indices = @transform_1, window_bounds = array<i64: 1, 16, 16>}, {transform_indices = @transform_2, window_bounds = array<i64: 1, 16, 16>}, {transform_indices = @transform_3, window_bounds = array<i64: 1, 16, 16>}, {pipeline_mode = #tpu.pipeline_mode<synchronous>, transform_indices = @transform_4, window_bounds = array<i64: 3, 16, 256>}, {pipeline_mode = #tpu.pipeline_mode<synchronous>, transform_indices = @transform_5, window_bounds = array<i64: 1, 256>}, {transform_indices = @transform_6, window_bounds = array<i64: 1, 16, 128>}]} {
    %c0 = arith.constant 0 : index
    %c0_0 = arith.constant 0 : index
    %c0_1 = arith.constant 0 : index
    %0 = vector.load %arg2[%c0, %c0_0, %c0_1] : memref<1x16x16xbf16, #tpu.memory_space<vmem>>, vector<1x16x16xbf16>
    %1 = vector.shape_cast %0 : vector<1x16x16xbf16> to vector<16x16xbf16>
    %c0_2 = arith.constant 0 : index
    %c0_3 = arith.constant 0 : index
    %c0_4 = arith.constant 0 : index
    %2 = vector.load %arg6[%c0_2, %c0_3, %c0_4] : memref<3x16x256xbf16, #tpu.memory_space<vmem>>, vector<1x16x256xbf16>
    %3 = vector.shape_cast %2 : vector<1x16x256xbf16> to vector<16x256xbf16>
    %cst = arith.constant dense<0.000000e+00> : vector<16x256xf32>
    %4 = tpu.matmul %1, %3, %cst {dimension_numbers = #tpu.dot_dimension_numbers<[1], [0], [0], [1], [0, 0, 1, 1], [], []>} : vector<16x16xbf16>, vector<16x256xbf16>, vector<16x256xf32> -> vector<16x256xf32>
    %c0_5 = arith.constant 0 : index
    %c0_6 = arith.constant 0 : index
    %5 = vector.load %arg7[%c0_5, %c0_6] : memref<1x256xf32, #tpu.memory_space<vmem>>, vector<1x256xf32>
    %6 = vector.broadcast %5 : vector<1x256xf32> to vector<16x256xf32>
    %7 = arith.addf %4, %6 : vector<16x256xf32>
    %c0_7 = arith.constant 0 : index
    %c0_8 = arith.constant 0 : index
    %c0_9 = arith.constant 0 : index
    %8 = vector.load %arg4[%c0_7, %c0_8, %c0_9] : memref<1x16x16xbf16, #tpu.memory_space<vmem>>, vector<1x16x16xbf16>
    %9 = vector.shape_cast %8 : vector<1x16x16xbf16> to vector<16x16xbf16>
    %c1 = arith.constant 1 : index
    %c0_10 = arith.constant 0 : index
    %c0_11 = arith.constant 0 : index
    %10 = vector.load %arg6[%c1, %c0_10, %c0_11] : memref<3x16x256xbf16, #tpu.memory_space<vmem>>, vector<1x16x256xbf16>
    %11 = vector.shape_cast %10 : vector<1x16x256xbf16> to vector<16x256xbf16>
    %cst_12 = arith.constant dense<0.000000e+00> : vector<16x256xf32>
    %12 = tpu.matmul %9, %11, %cst_12 {dimension_numbers = #tpu.dot_dimension_numbers<[1], [0], [0], [1], [0, 0, 1, 1], [], []>} : vector<16x16xbf16>, vector<16x256xbf16>, vector<16x256xf32> -> vector<16x256xf32>
    %13 = arith.addf %7, %12 : vector<16x256xf32>
    %c0_13 = arith.constant 0 : index
    %c0_14 = arith.constant 0 : index
    %c0_15 = arith.constant 0 : index
    %14 = vector.load %arg2[%c0_13, %c0_14, %c0_15] : memref<1x16x16xbf16, #tpu.memory_space<vmem>>, vector<1x16x16xbf16>
    %15 = vector.shape_cast %14 : vector<1x16x16xbf16> to vector<16x16xbf16>
    %c0_16 = arith.constant 0 : index
    %c0_17 = arith.constant 0 : index
    %c0_18 = arith.constant 0 : index
    %16 = vector.load %arg3[%c0_16, %c0_17, %c0_18] : memref<1x16x16xbf16, #tpu.memory_space<vmem>>, vector<1x16x16xbf16>
    %17 = vector.shape_cast %16 : vector<1x16x16xbf16> to vector<16x16xbf16>
    %18 = tpu.concatenate %15, %17 in 0 : vector<16x16xbf16>, vector<16x16xbf16> -> vector<32x16xbf16>
    %19 = vector.extract_strided_slice %18 {offsets = [1, 0], sizes = [16, 16], strides = [1, 1]} : vector<32x16xbf16> to vector<16x16xbf16>
    %c2 = arith.constant 2 : index
    %c0_19 = arith.constant 0 : index
    %c0_20 = arith.constant 0 : index
    %20 = vector.load %arg6[%c2, %c0_19, %c0_20] : memref<3x16x256xbf16, #tpu.memory_space<vmem>>, vector<1x16x256xbf16>
    %21 = vector.shape_cast %20 : vector<1x16x256xbf16> to vector<16x256xbf16>
    %cst_21 = arith.constant dense<0.000000e+00> : vector<16x256xf32>
    %22 = tpu.matmul %19, %21, %cst_21 {dimension_numbers = #tpu.dot_dimension_numbers<[1], [0], [0], [1], [0, 0, 1, 1], [], []>} : vector<16x16xbf16>, vector<16x256xbf16>, vector<16x256xf32> -> vector<16x256xf32>
    %23 = arith.addf %13, %22 : vector<16x256xf32>
    %24 = vector.extract_strided_slice %23 {offsets = [0, 0], sizes = [16, 128], strides = [1, 1]} : vector<16x256xf32> to vector<16x128xf32>
    %25 = vector.extract_strided_slice %23 {offsets = [0, 128], sizes = [16, 128], strides = [1, 1]} : vector<16x256xf32> to vector<16x128xf32>
    %26 = arith.negf %25 : vector<16x128xf32>
    %27 = math.exp %26 : vector<16x128xf32>
    %cst_22 = arith.constant 1.000000e+00 : f32
    %28 = vector.broadcast %cst_22 : f32 to vector<16x128xf32>
    %29 = arith.addf %28, %27 : vector<16x128xf32>
    %30 = arith.divf %28, %29 : vector<16x128xf32>
    %31 = arith.mulf %24, %30 : vector<16x128xf32>
    %32 = arith.truncf %31 : vector<16x128xf32> to vector<16x128xbf16>
    %c0_23 = arith.constant 0 : index
    %c0_24 = arith.constant 0 : index
    %c0_25 = arith.constant 0 : index
    %33 = vector.load %arg8[%c0_23, %c0_24, %c0_25] : memref<1x16x128xbf16, #tpu.memory_space<vmem>>, vector<1x16x128xbf16>
    %34 = vector.shape_cast %33 : vector<1x16x128xbf16> to vector<16x128xbf16>
    %35 = vector.shape_cast %32 : vector<16x128xbf16> to vector<1x16x128xbf16>
    tpu.vector_store %arg8[%c0_23, %c0_24, %c0_25], %35 {strides = array<i32>} : memref<1x16x128xbf16, #tpu.memory_space<vmem>>, vector<1x16x128xbf16>,
    return
  }
  func.func @transform_0(%arg0: i32, %arg1: i32) -> (i32, i32, i32) {
    %c0_i32 = arith.constant 0 : i32
    %c0_i32_0 = arith.constant 0 : i32
    return %arg0, %arg1, %c0_i32 : i32, i32, i32
  }
  func.func @transform_1(%arg0: i32, %arg1: i32) -> (i32, i32, i32) {
    %c1_i32 = arith.constant 1 : i32
    %0 = arith.addi %arg1, %c1_i32 : i32
    %c1_i32_0 = arith.constant 1 : i32
    %1 = arith.muli %0, %c1_i32_0 : i32
    %c0_i32 = arith.constant 0 : i32
    %c0_i32_1 = arith.constant 0 : i32
    return %arg0, %1, %c0_i32 : i32, i32, i32
  }
  func.func @transform_2(%arg0: i32, %arg1: i32) -> (i32, i32, i32) {
    %c0_i32 = arith.constant 0 : i32
    %c0_i32_0 = arith.constant 0 : i32
    return %arg0, %arg1, %c0_i32 : i32, i32, i32
  }
  func.func @transform_3(%arg0: i32, %arg1: i32) -> (i32, i32, i32) {
    %c1_i32 = arith.constant 1 : i32
    %0 = arith.addi %arg1, %c1_i32 : i32
    %c1_i32_0 = arith.constant 1 : i32
    %1 = arith.muli %0, %c1_i32_0 : i32
    %c0_i32 = arith.constant 0 : i32
    %c0_i32_1 = arith.constant 0 : i32
    return %arg0, %1, %c0_i32 : i32, i32, i32
  }
  func.func @transform_4(%arg0: i32, %arg1: i32) -> (i32, i32, i32) {
    %c0_i32 = arith.constant 0 : i32
    %c0_i32_0 = arith.constant 0 : i32
    %c0_i32_1 = arith.constant 0 : i32
    %c0_i32_2 = arith.constant 0 : i32
    return %c0_i32, %c0_i32_0, %c0_i32_1 : i32, i32, i32
  }
  func.func @transform_5(%arg0: i32, %arg1: i32) -> (i32, i32) {
    %c0_i32 = arith.constant 0 : i32
    %c0_i32_0 = arith.constant 0 : i32
    %c0_i32_1 = arith.constant 0 : i32
    return %c0_i32, %c0_i32_0 : i32, i32
  }
  func.func @transform_6(%arg0: i32, %arg1: i32) -> (i32, i32, i32) {
    %c0_i32 = arith.constant 0 : i32
    %c0_i32_0 = arith.constant 0 : i32
    return %arg0, %arg1, %c0_i32 : i32, i32, i32
  }
}

</mosaic_0001>

<llo_original>
// kernel: tpu_custom_call.1
$region0: #{tpu_custom_call.1}
  #allocation0 [shape = 'u32[]', space=smem, size = 0x4, offset = 0x4, fixed_abs, tag = 'smem constant byte address 0x4 - core index']
  #allocation1 [shape = 'u32[144,128]{1,0:T(1,128)}', space=vmem, size = 0x12000, scoped, tag = 'internal scratch']
  %s0 = inlined_call_operand.vmem [shape: bf16[2,32,16], index: 0, kind: input, shape index: {}]
  %s1 = inlined_call_operand.vmem [shape: bf16[2,32,16], index: 1, kind: input, shape index: {}]
  %s2 = inlined_call_operand.vmem [shape: bf16[2,32,16], index: 2, kind: input, shape index: {}]
  %s3 = inlined_call_operand.vmem [shape: bf16[2,32,16], index: 3, kind: input, shape index: {}]
  %s4 = inlined_call_operand.vmem [shape: bf16[3,16,256], index: 4, kind: input, shape index: {}]
  %s5 = inlined_call_operand.vmem [shape: f32[1,256], index: 5, kind: input, shape index: {}]
  %s6 = inlined_call_operand.hbm [shape: bf16[2,16,128], index: 6, kind: output, shape index: {}]
  %s7 = sld [smem:[#allocation0]]
  $region57: #{tpu_custom_call.1} parent=0
    _
  %s9 = ssub.s32 1, %s7
  %s10 = scalar_select 0, %s9, %s7
  $region1: #{tpu_custom_call.1} parent=0
    #allocation2 [shape = 'u8[8192]{0}', space=vmem, size = 0x2000, scoped, tag = 'output window, operand 0']
    #allocation3 [shape = 's32[2]{0}', space=sflag, size = 0x8, scoped, tag = 'scoped memory for tpu_custom_call.1']
    %11 = vsyncpa [#allocation3], 0
    %s12 = scalar_lea.sflag [#allocation3], 1
    %13 = vsyncpa %s12, 0
    loop: start=0, step=1, limit=4
    $region2: #{tpu_custom_call.1} parent=1 // loop_pre_header
      _
    $region3: #{tpu_custom_call.1} parent=1 // loop_header
      %s15 = sphi 0, %s19
      %p16 = scmp.ge.s32.totalorder %s15, 4
      %s22 = sphi 0, %s34
      %s23 = sphi 0, %s30
      %s24 = sphi 0, %s22
      %s25 = sphi 0, %s23
      %s26 = sphi 0, %s24
      %s27 = sphi 0, %s25
      %s39 = sphi 0, %s41
      %s42 = sphi 0, %s39
      %s43 = sphi 0, %s42
      %s59 = sphi 0, %s43
      %s69 = sphi 0, %s71
      %s72 = sphi 0, %s69
      %s73 = sphi 0, %s72
      %s89 = sphi 0, %s73
      %s97 = sphi 0, %s99
      %s100 = sphi 0, %s97
      %s101 = sphi 0, %s100
      %s117 = sphi 0, %s101
      %s127 = sphi 0, %s129
      %s130 = sphi 0, %s127
      %s131 = sphi 0, %s130
      %s147 = sphi 0, %s131
      %s151 = sphi 0, %s151
      %s153 = sphi 0, %s151
      %s154 = sphi 0, %s153
      %s168 = sphi 0, %s154
      %s172 = sphi 0, %s172
      %s174 = sphi 0, %s172
      %s175 = sphi 0, %s174
      %s189 = sphi 0, %s175
      %s197 = sphi 0, %s199
      %s200 = sphi 0, %s197
      %s201 = sphi 0, %s200
      %s217 = sphi 0, %s201
    $region4: #{tpu_custom_call.1} parent=1 // loop_header_branch
      %18 = sbr.rel (%p16) target = $region8
    $region5: #{tpu_custom_call.1} parent=1 // loop_body
      %s20 = ssub.s32 %s15, 1
      %s21 = ssub.s32 %s15, 2
      %s28 = sadd.s32 1, %s23
      %p29 = scmp.ge.s32.totalorder %s28, 1
      %s30 = scalar_select %p29, 0, %s28
      %s31 = sadd.s32 1, %s22
      %s32 = scalar_select %p29, %s31, %s22
      %p33 = scmp.ge.s32.totalorder %s32, 2
      %s34 = scalar_select %p33, 0, %s32
      %s35 = ssub.s32 %s22, %s34
      %s36 = ssub.s32 %s23, %s30
      %s37 = sor.u32 %s35, %s36
      %p38 = scmp.eq.s32.totalorder %s37, 0
      %s40 = sadd.s32 %s39, 1
      %s41 = scalar_select %p38, %s39, %s40
      %p44 = pneg %p38
      %p45 = scmp.eq.s32.totalorder %s15, 1
      %p46 = por %p44, %p45
      %p47 = scmp.ne.s32.totalorder %s39, %s42
      %p48 = scmp.eq.s32.totalorder %s15, 0
      %p49 = por %p47, %p48
      %p50 = scmp.ne.s32.totalorder %s39, %s42
      %p51 = scmp.eq.s32.totalorder %s20, 1
      %p52 = por %p50, %p51
      %p53 = scmp.ne.s32.totalorder %s42, %s43
      %p54 = scmp.eq.s32.totalorder %s20, 0
      %p55 = por %p53, %p54
      %p56 = scmp.ne.s32.totalorder %s42, %s43
      %p57 = scmp.eq.s32.totalorder %s21, 1
      %p58 = por %p56, %p57
      %p60 = scmp.ne.s32.totalorder %s43, %s59
      %p61 = scmp.eq.s32.totalorder %s21, 0
      %p62 = por %p60, %p61
      %s63 = sadd.s32 %s23, 1
      %s64 = sadd.s32 %s30, 1
      %s65 = ssub.s32 %s22, %s34
      %s66 = ssub.s32 %s63, %s64
      %s67 = sor.u32 %s65, %s66
      %p68 = scmp.eq.s32.totalorder %s67, 0
      %s70 = sadd.s32 %s69, 1
      %s71 = scalar_select %p68, %s69, %s70
      %p74 = pneg %p68
      %p75 = scmp.eq.s32.totalorder %s15, 1
      %p76 = por %p74, %p75
      %p77 = scmp.ne.s32.totalorder %s69, %s72
      %p78 = scmp.eq.s32.totalorder %s15, 0
      %p79 = por %p77, %p78
      %p80 = scmp.ne.s32.totalorder %s69, %s72
      %p81 = scmp.eq.s32.totalorder %s20, 1
      %p82 = por %p80, %p81
      %p83 = scmp.ne.s32.totalorder %s72, %s73
      %p84 = scmp.eq.s32.totalorder %s20, 0
      %p85 = por %p83, %p84
      %p86 = scmp.ne.s32.totalorder %s72, %s73
      %p87 = scmp.eq.s32.totalorder %s21, 1
      %p88 = por %p86, %p87
      %p90 = scmp.ne.s32.totalorder %s73, %s89
      %p91 = scmp.eq.s32.totalorder %s21, 0
      %p92 = por %p90, %p91
      %s93 = ssub.s32 %s22, %s34
      %s94 = ssub.s32 %s23, %s30
      %s95 = sor.u32 %s93, %s94
      %p96 = scmp.eq.s32.totalorder %s95, 0
      %s98 = sadd.s32 %s97, 1
      %s99 = scalar_select %p96, %s97, %s98
      %p102 = pneg %p96
      %p103 = scmp.eq.s32.totalorder %s15, 1
      %p104 = por %p102, %p103
      %p105 = scmp.ne.s32.totalorder %s97, %s100
      %p106 = scmp.eq.s32.totalorder %s15, 0
      %p107 = por %p105, %p106
      %p108 = scmp.ne.s32.totalorder %s97, %s100
      %p109 = scmp.eq.s32.totalorder %s20, 1
      %p110 = por %p108, %p109
      %p111 = scmp.ne.s32.totalorder %s100, %s101
      %p112 = scmp.eq.s32.totalorder %s20, 0
      %p113 = por %p111, %p112
      %p114 = scmp.ne.s32.totalorder %s100, %s101
      %p115 = scmp.eq.s32.totalorder %s21, 1
      %p116 = por %p114, %p115
      %p118 = scmp.ne.s32.totalorder %s101, %s117
      %p119 = scmp.eq.s32.totalorder %s21, 0
      %p120 = por %p118, %p119
      %s121 = sadd.s32 %s23, 1
      %s122 = sadd.s32 %s30, 1
      %s123 = ssub.s32 %s22, %s34
      %s124 = ssub.s32 %s121, %s122
      %s125 = sor.u32 %s123, %s124
      %p126 = scmp.eq.s32.totalorder %s125, 0
      %s128 = sadd.s32 %s127, 1
      %s129 = scalar_select %p126, %s127, %s128
      %p132 = pneg %p126
      %p133 = scmp.eq.s32.totalorder %s15, 1
      %p134 = por %p132, %p133
      %p135 = scmp.ne.s32.totalorder %s127, %s130
      %p136 = scmp.eq.s32.totalorder %s15, 0
      %p137 = por %p135, %p136
      %p138 = scmp.ne.s32.totalorder %s127, %s130
      %p139 = scmp.eq.s32.totalorder %s20, 1
      %p140 = por %p138, %p139
      %p141 = scmp.ne.s32.totalorder %s130, %s131
      %p142 = scmp.eq.s32.totalorder %s20, 0
      %p143 = por %p141, %p142
      %p144 = scmp.ne.s32.totalorder %s130, %s131
      %p145 = scmp.eq.s32.totalorder %s21, 1
      %p146 = por %p144, %p145
      %p148 = scmp.ne.s32.totalorder %s131, %s147
      %p149 = scmp.eq.s32.totalorder %s21, 0
      %p150 = por %p148, %p149
      %s152 = sadd.s32 %s151, 1
      %p155 = scmp.eq.s32.totalorder %s15, 1
      %p156 = scmp.ne.s32.totalorder %s151, %s153
      %p157 = scmp.eq.s32.totalorder %s15, 0
      %p158 = por %p156, %p157
      %p159 = scmp.ne.s32.totalorder %s151, %s153
      %p160 = scmp.eq.s32.totalorder %s20, 1
      %p161 = por %p159, %p160
      %p162 = scmp.ne.s32.totalorder %s153, %s154
      %p163 = scmp.eq.s32.totalorder %s20, 0
      %p164 = por %p162, %p163
      %p165 = scmp.ne.s32.totalorder %s153, %s154
      %p166 = scmp.eq.s32.totalorder %s21, 1
      %p167 = por %p165, %p166
      %p169 = scmp.ne.s32.totalorder %s154, %s168
      %p170 = scmp.eq.s32.totalorder %s21, 0
      %p171 = por %p169, %p170
      %s173 = sadd.s32 %s172, 1
      %p176 = scmp.eq.s32.totalorder %s15, 1
      %p177 = scmp.ne.s32.totalorder %s172, %s174
      %p178 = scmp.eq.s32.totalorder %s15, 0
      %p179 = por %p177, %p178
      %p180 = scmp.ne.s32.totalorder %s172, %s174
      %p181 = scmp.eq.s32.totalorder %s20, 1
      %p182 = por %p180, %p181
      %p183 = scmp.ne.s32.totalorder %s174, %s175
      %p184 = scmp.eq.s32.totalorder %s20, 0
      %p185 = por %p183, %p184
      %p186 = scmp.ne.s32.totalorder %s174, %s175
      %p187 = scmp.eq.s32.totalorder %s21, 1
      %p188 = por %p186, %p187
      %p190 = scmp.ne.s32.totalorder %s175, %s189
      %p191 = scmp.eq.s32.totalorder %s21, 0
      %p192 = por %p190, %p191
      %s193 = ssub.s32 %s22, %s34
      %s194 = ssub.s32 %s23, %s30
      %s195 = sor.u32 %s193, %s194
      %p196 = scmp.eq.s32.totalorder %s195, 0
      %s198 = sadd.s32 %s197, 1
      %s199 = scalar_select %p196, %s197, %s198
      %p202 = pneg %p196
      %p203 = scmp.eq.s32.totalorder %s15, 1
      %p204 = por %p202, %p203
      %p205 = scmp.ne.s32.totalorder %s197, %s200
      %p206 = scmp.eq.s32.totalorder %s15, 0
      %p207 = por %p205, %p206
      %p208 = scmp.ne.s32.totalorder %s197, %s200
      %p209 = scmp.eq.s32.totalorder %s20, 1
      %p210 = por %p208, %p209
      %p211 = scmp.ne.s32.totalorder %s200, %s201
      %p212 = scmp.eq.s32.totalorder %s20, 0
      %p213 = por %p211, %p212
      %p214 = scmp.ne.s32.totalorder %s200, %s201
      %p215 = scmp.eq.s32.totalorder %s21, 1
      %p216 = por %p214, %p215
      %p218 = scmp.ne.s32.totalorder %s201, %s217
      %p219 = scmp.eq.s32.totalorder %s21, 0
      %p220 = por %p218, %p219
      %p221 = scmp.le.s32.totalorder 1, %s15
      %p222 = scmp.lt.s32.totalorder %s15, 3
      %p223 = pnand %p221, %p222
      %p224 = pneg %p223
      // Predicated region
      $region9: #{tpu_custom_call.1} parent=5 // pred_check
        _
      $region10: #{tpu_custom_call.1} parent=5 // pred_check_branch
        %226 = sbr.rel (%p223) target = $region12
      $region11: #{tpu_custom_call.1} parent=5 // pred_region
        %s227 = ssub.s32 %s15, 1
        // Predicated region
        $region13: #{tpu_custom_call.1} parent=11 // pred_check
          %p228 = pneg %p164
        $region14: #{tpu_custom_call.1} parent=11 // pred_check_branch
          %230 = sbr.rel (%p228) target = $region16
        $region15: #{tpu_custom_call.1} parent=11 // pred_region
          _
        $region16: #{tpu_custom_call.1} parent=11 // pred_fallthru
          _
        // Predicated region
        $region17: #{tpu_custom_call.1} parent=11 // pred_check
          %p231 = pneg %p185
        $region18: #{tpu_custom_call.1} parent=11 // pred_check_branch
          %233 = sbr.rel (%p231) target = $region20
        $region19: #{tpu_custom_call.1} parent=11 // pred_region
          _
        $region20: #{tpu_custom_call.1} parent=11 // pred_fallthru
          _
      $region12: #{tpu_custom_call.1} parent=5 // pred_fallthru
        _
      %p234 = scmp.lt.s32.totalorder %s15, 2
      // Predicated region
      $region21: #{tpu_custom_call.1} parent=5 // pred_check
        %p235 = pneg %p234
      $region22: #{tpu_custom_call.1} parent=5 // pred_check_branch
        %237 = sbr.rel (%p235) target = $region24
      $region23: #{tpu_custom_call.1} parent=5 // pred_region
        // Predicated region
        $region25: #{tpu_custom_call.1} parent=23 // pred_check
          %p238 = pneg %p49
        $region26: #{tpu_custom_call.1} parent=23 // pred_check_branch
          %240 = sbr.rel (%p238) target = $region28
        $region27: #{tpu_custom_call.1} parent=23 // pred_region
          %s241 = smul.u32 2, %s23
          %p242 = scmp.lt.s32.totalorder %s22, 1
          %s243 = scalar_select %p242, %s22, 1
          %p244 = scmp.lt.s32.totalorder %s241, 3
          %s245 = scalar_select %p244, %s241, 3
          %s246 = smul.addr %s243, 4
          %s247 = sadd.s32 %s245, %s246
          %s248 = smul.addr %s247, 4
          %s249 = scalar_lea.vmem %s0, %s248
          %s250 = smul.u32 2, %s23
        $region28: #{tpu_custom_call.1} parent=23 // pred_fallthru
          _
        // Predicated region
        $region29: #{tpu_custom_call.1} parent=23 // pred_check
          %p251 = pneg %p79
        $region30: #{tpu_custom_call.1} parent=23 // pred_check_branch
          %253 = sbr.rel (%p251) target = $region32
        $region31: #{tpu_custom_call.1} parent=23 // pred_region
          %s254 = sadd.s32 %s23, 1
          %s255 = smul.u32 2, %s254
          %p256 = scmp.lt.s32.totalorder %s22, 1
          %s257 = scalar_select %p256, %s22, 1
          %p258 = scmp.lt.s32.totalorder %s255, 3
          %s259 = scalar_select %p258, %s255, 3
          %s260 = smul.addr %s257, 4
          %s261 = sadd.s32 %s259, %s260
          %s262 = smul.addr %s261, 4
          %s263 = scalar_lea.vmem %s1, %s262
          %s264 = sadd.s32 %s23, 1
          %s265 = smul.u32 2, %s264
        $region32: #{tpu_custom_call.1} parent=23 // pred_fallthru
          _
        // Predicated region
        $region33: #{tpu_custom_call.1} parent=23 // pred_check
          %p266 = pneg %p107
        $region34: #{tpu_custom_call.1} parent=23 // pred_check_branch
          %268 = sbr.rel (%p266) target = $region36
        $region35: #{tpu_custom_call.1} parent=23 // pred_region
          %s269 = smul.u32 2, %s23
          %p270 = scmp.lt.s32.totalorder %s22, 1
          %s271 = scalar_select %p270, %s22, 1
          %p272 = scmp.lt.s32.totalorder %s269, 3
          %s273 = scalar_select %p272, %s269, 3
          %s274 = smul.addr %s271, 4
          %s275 = sadd.s32 %s273, %s274
          %s276 = smul.addr %s275, 4
          %s277 = scalar_lea.vmem %s2, %s276
          %s278 = smul.u32 2, %s23
        $region36: #{tpu_custom_call.1} parent=23 // pred_fallthru
          _
        // Predicated region
        $region37: #{tpu_custom_call.1} parent=23 // pred_check
          %p279 = pneg %p137
        $region38: #{tpu_custom_call.1} parent=23 // pred_check_branch
          %281 = sbr.rel (%p279) target = $region40
        $region39: #{tpu_custom_call.1} parent=23 // pred_region
          %s282 = sadd.s32 %s23, 1
          %s283 = smul.u32 2, %s282
          %p284 = scmp.lt.s32.totalorder %s22, 1
          %s285 = scalar_select %p284, %s22, 1
          %p286 = scmp.lt.s32.totalorder %s283, 3
          %s287 = scalar_select %p286, %s283, 3
          %s288 = smul.addr %s285, 4
          %s289 = sadd.s32 %s287, %s288
          %s290 = smul.addr %s289, 4
          %s291 = scalar_lea.vmem %s3, %s290
          %s292 = sadd.s32 %s23, 1
          %s293 = smul.u32 2, %s292
        $region40: #{tpu_custom_call.1} parent=23 // pred_fallthru
          _
      $region24: #{tpu_custom_call.1} parent=5 // pred_fallthru
        _
      %p294 = scmp.le.s32.totalorder 1, %s15
      %p295 = scmp.lt.s32.totalorder %s15, 3
      %p296 = pnand %p294, %p295
      %p297 = pneg %p296
      // Predicated region
      $region41: #{tpu_custom_call.1} parent=5 // pred_check
        _
      $region42: #{tpu_custom_call.1} parent=5 // pred_check_branch
        %299 = sbr.rel (%p296) target = $region44
      $region43: #{tpu_custom_call.1} parent=5 // pred_region
        %s300 = ssub.s32 %s15, 1
        %s301 = smul.u32 2, %s25
        %p302 = scmp.lt.s32.totalorder %s24, 1
        %s303 = scalar_select %p302, %s24, 1
        %p304 = scmp.lt.s32.totalorder %s301, 3
        %s305 = scalar_select %p304, %s301, 3
        %s306 = smul.addr %s303, 4
        %s307 = sadd.s32 %s305, %s306
        %s308 = smul.addr %s307, 4
        %s309 = scalar_lea.vmem %s0, %s308
        %p310 = pneg %p55
        %p311 = pneg %p52
        %s312 = sadd.s32 %s25, 1
        %s313 = smul.u32 2, %s312
        %p314 = scmp.lt.s32.totalorder %s24, 1
        %s315 = scalar_select %p314, %s24, 1
        %p316 = scmp.lt.s32.totalorder %s313, 3
        %s317 = scalar_select %p316, %s313, 3
        %s318 = smul.addr %s315, 4
        %s319 = sadd.s32 %s317, %s318
        %s320 = smul.addr %s319, 4
        %s321 = scalar_lea.vmem %s1, %s320
        %p322 = pneg %p85
        %p323 = pneg %p82
        %s324 = smul.u32 2, %s25
        %p325 = scmp.lt.s32.totalorder %s24, 1
        %s326 = scalar_select %p325, %s24, 1
        %p327 = scmp.lt.s32.totalorder %s324, 3
        %s328 = scalar_select %p327, %s324, 3
        %s329 = smul.addr %s326, 4
        %s330 = sadd.s32 %s328, %s329
        %s331 = smul.addr %s330, 4
        %s332 = scalar_lea.vmem %s2, %s331
        %p333 = pneg %p113
        %p334 = pneg %p110
        %s335 = sadd.s32 %s25, 1
        %s336 = smul.u32 2, %s335
        %p337 = scmp.lt.s32.totalorder %s24, 1
        %s338 = scalar_select %p337, %s24, 1
        %p339 = scmp.lt.s32.totalorder %s336, 3
        %s340 = scalar_select %p339, %s336, 3
        %s341 = smul.addr %s338, 4
        %s342 = sadd.s32 %s340, %s341
        %s343 = smul.addr %s342, 4
        %s344 = scalar_lea.vmem %s3, %s343
        %p345 = pneg %p143
        %p346 = pneg %p140
        %p347 = pneg %p164
        %p348 = pneg %p161
        %p349 = pneg %p185
        %p350 = pneg %p182
        %p351 = pneg %p213
        %p352 = pneg %p210
        %s353 = sand.u32 %s200, 1
        %s354 = scalar_lea.sflag [#allocation3], %s353
        %s355 = sand.u32 %s200, 1
        %s356 = smul.addr %s355, 8
        %s357 = scalar_lea.vmem [#allocation2], %s356
        %s358 = smul.u32 2, %s25
        %p359 = scmp.lt.s32.totalorder %s24, 1
        %s360 = scalar_select %p359, %s24, 1
        %p361 = scmp.lt.s32.totalorder %s358, 3
        %s362 = scalar_select %p361, %s358, 3
        %s363 = smul.addr %s360, 4
        %s364 = sadd.s32 %s362, %s363
        %s365 = smul.addr %s364, 4
        %s366 = scalar_lea.vmem %s0, %s365
        %s367 = smul.u32 2, %s25
        %s368 = sadd.s32 %s25, 1
        %s369 = smul.u32 2, %s368
        %p370 = scmp.lt.s32.totalorder %s24, 1
        %s371 = scalar_select %p370, %s24, 1
        %p372 = scmp.lt.s32.totalorder %s369, 3
        %s373 = scalar_select %p372, %s369, 3
        %s374 = smul.addr %s371, 4
        %s375 = sadd.s32 %s373, %s374
        %s376 = smul.addr %s375, 4
        %s377 = scalar_lea.vmem %s1, %s376
        %s378 = sadd.s32 %s25, 1
        %s379 = smul.u32 2, %s378
        %s380 = smul.u32 2, %s25
        %p381 = scmp.lt.s32.totalorder %s24, 1
        %s382 = scalar_select %p381, %s24, 1
        %p383 = scmp.lt.s32.totalorder %s380, 3
        %s384 = scalar_select %p383, %s380, 3
        %s385 = smul.addr %s382, 4
        %s386 = sadd.s32 %s384, %s385
        %s387 = smul.addr %s386, 4
        %s388 = scalar_lea.vmem %s2, %s387
        %s389 = smul.u32 2, %s25
        %s390 = sadd.s32 %s25, 1
        %s391 = smul.u32 2, %s390
        %p392 = scmp.lt.s32.totalorder %s24, 1
        %s393 = scalar_select %p392, %s24, 1
        %p394 = scmp.lt.s32.totalorder %s391, 3
        %s395 = scalar_select %p394, %s391, 3
        %s396 = smul.addr %s393, 4
        %s397 = sadd.s32 %s395, %s396
        %s398 = smul.addr %s397, 4
        %s399 = scalar_lea.vmem %s3, %s398
        %s400 = sadd.s32 %s25, 1
        %s401 = smul.u32 2, %s400
        %s402 = smul.u32 2, %s25
        %v404 = vld [vmem:[%s366] sm:$0xf]
        %v405 = vld [vmem:[%s366 + $0x4] sm:$0xf]
        %v406 = vld [vmem:[%s4] sm:$0xff]
        %v407 = vld [vmem:[%s4 + $0x8] sm:$0xff]
        %v408 = vld [vmem:[%s5] sm:$0x3]
        %v410 = vlaneseq
        %v411 = vshrl.u32 %v410, 7
        %v412 = vsub.s32 0, %v411
        %v413 = vrot.slane %v408, %v412
        %v414 = vlaneseq
        %v415 = vshrl.u32 %v414, 7
        %v416 = vsub.s32 1, %v415
        %v417 = vrot.slane %v408, %v416
        %v422 = vunpack.c.l.b16 %v404
        %v423 = vunpack.c.l.b16 %v405
        %v424 = vpack.c.b16 %v423, %v422
        %v427 = vunpack.c.l.b16 %v406
        %v428 = vunpack.c.h.b16 %v406
        %v429 = vunpack.c.l.b16 %v407
        %v430 = vunpack.c.h.b16 %v407
        %v431 = vpack.c.b16 %v429, %v427
        %v432 = vpack.c.b16 %v430, %v428
        %vm435 = vcmask 130048
        %v437 = vsel %vm435, %v424, 0
        %439 = vmatprep.subr.bf16.mxu0 0
        %440 = vmatpush1.bf16.msra.mxu0 0
        %441 = vmatprep.subr.bf16.mxu0 0
        %442 = vmatpush1.bf16.msra.mxu0 0
        %443 = vmatprep.subr.bf16.mxu0 0
        %444 = vmatpush1.bf16.msra.mxu0 0
        %445 = vmatprep.subr.bf16.mxu0 0
        %446 = vmatpush1.bf16.msra.mxu0 0
        %447 = vmatprep.subr.bf16.mxu0 0
        %448 = vmatpush1.bf16.msra.mxu0 0
        %449 = vmatprep.subr.bf16.mxu0 0
        %450 = vmatpush1.bf16.msra.mxu0 0
        %451 = vmatprep.subr.bf16.mxu0 0
        %452 = vmatpush1.bf16.msra.mxu0 0
        %453 = vmatprep.subr.bf16.mxu0 %v432
        %454 = vmatpush1.bf16.msra.mxu0 %v431
        %455 = vmatprep.subr.bf16.mxu0 0
        %456 = vmatpush2.bf16.msra.mxu0 0
        %457 = vmatprep.subr.bf16.mxu0 0
        %458 = vmatpush2.bf16.msra.mxu0 0
        %459 = vmatprep.subr.bf16.mxu0 0
        %460 = vmatpush2.bf16.msra.mxu0 0
        %461 = vmatprep.subr.bf16.mxu0 0
        %462 = vmatpush2.bf16.msra.mxu0 0
        %463 = vmatprep.subr.bf16.mxu0 0
        %464 = vmatpush2.bf16.msra.mxu0 0
        %465 = vmatprep.subr.bf16.mxu0 0
        %466 = vmatpush2.bf16.msra.mxu0 0
        %467 = vmatprep.subr.bf16.mxu0 0
        %468 = vmatpush2.bf16.msra.mxu0 0
        %469 = vmatprep.subr.bf16.mxu0 0
        %470 = vmatpush2.bf16.msra.mxu0 0
        %471 = vmatprep.mubr.bf16.mxu0 0
        %472 = vmatmul.mubr.bf16.gmra.mxu0 %v437
        %v473 = vpop.f32.mrf.mxu0
        %v474 = vadd.f32 %v413, %v473
        %v475 = vpop.f32.mrf.mxu0
        %v476 = vadd.f32 %v417, %v475
        %v477 = vpop.f32.mrf.mxu0
        %v478 = vadd.f32 %v413, %v477
        %v479 = vpop.f32.mrf.mxu0
        %v480 = vadd.f32 %v417, %v479
        %481 = vdwg.mxu0
        %v482 = vld [vmem:[%s388] sm:$0xf]
        %v483 = vld [vmem:[%s388 + $0x4] sm:$0xf]
        %s484 = scalar_lea.vmem %s4, 16
        %v485 = vld [vmem:[%s484] sm:$0xff]
        %v486 = vld [vmem:[%s484 + $0x8] sm:$0xff]
        %v489 = vunpack.c.l.b16 %v482
        %v490 = vunpack.c.l.b16 %v483
        %v491 = vpack.c.b16 %v490, %v489
        %v494 = vunpack.c.l.b16 %v485
        %v495 = vunpack.c.h.b16 %v485
        %v496 = vunpack.c.l.b16 %v486
        %v497 = vunpack.c.h.b16 %v486
        %v498 = vpack.c.b16 %v496, %v494
        %v499 = vpack.c.b16 %v497, %v495
        %v503 = vsel %vm435, %v491, 0
        %505 = vmatprep.subr.bf16.mxu0 0
        %506 = vmatpush1.bf16.msra.mxu0 0
        %507 = vmatprep.subr.bf16.mxu0 0
        %508 = vmatpush1.bf16.msra.mxu0 0
        %509 = vmatprep.subr.bf16.mxu0 0
        %510 = vmatpush1.bf16.msra.mxu0 0
        %511 = vmatprep.subr.bf16.mxu0 0
        %512 = vmatpush1.bf16.msra.mxu0 0
        %513 = vmatprep.subr.bf16.mxu0 0
        %514 = vmatpush1.bf16.msra.mxu0 0
        %515 = vmatprep.subr.bf16.mxu0 0
        %516 = vmatpush1.bf16.msra.mxu0 0
        %517 = vmatprep.subr.bf16.mxu0 0
        %518 = vmatpush1.bf16.msra.mxu0 0
        %519 = vmatprep.subr.bf16.mxu0 %v499
        %520 = vmatpush1.bf16.msra.mxu0 %v498
        %521 = vmatprep.subr.bf16.mxu0 0
        %522 = vmatpush2.bf16.msra.mxu0 0
        %523 = vmatprep.subr.bf16.mxu0 0
        %524 = vmatpush2.bf16.msra.mxu0 0
        %525 = vmatprep.subr.bf16.mxu0 0
        %526 = vmatpush2.bf16.msra.mxu0 0
        %527 = vmatprep.subr.bf16.mxu0 0
        %528 = vmatpush2.bf16.msra.mxu0 0
        %529 = vmatprep.subr.bf16.mxu0 0
        %530 = vmatpush2.bf16.msra.mxu0 0
        %531 = vmatprep.subr.bf16.mxu0 0
        %532 = vmatpush2.bf16.msra.mxu0 0
        %533 = vmatprep.subr.bf16.mxu0 0
        %534 = vmatpush2.bf16.msra.mxu0 0
        %535 = vmatprep.subr.bf16.mxu0 0
        %536 = vmatpush2.bf16.msra.mxu0 0
        %537 = vmatprep.mubr.bf16.mxu0 0
        %538 = vmatmul.mubr.bf16.gmra.mxu0 %v503
        %v539 = vpop.f32.mrf.mxu0
        %v540 = vadd.f32 0.0, %v539
        %v541 = vpop.f32.mrf.mxu0
        %v542 = vadd.f32 0.0, %v541
        %v543 = vpop.f32.mrf.mxu0
        %v544 = vadd.f32 0.0, %v543
        %v545 = vpop.f32.mrf.mxu0
        %v546 = vadd.f32 0.0, %v545
        %547 = vdwg.mxu0
        %v548 = vadd.f32 %v474, %v540
        %v549 = vadd.f32 %v476, %v542
        %v550 = vadd.f32 %v478, %v544
        %v551 = vadd.f32 %v480, %v546
        %v552 = vld [vmem:[%s377] sm:$0xf]
        %v553 = vld [vmem:[%s377 + $0x4] sm:$0xf]
        %v556 = vunpack.c.l.b16 %v552
        %v557 = vunpack.c.l.b16 %v553
        %v558 = vpack.c.b16 %v557, %v556
        %s559 = scalar_lea.vmem %s4, 32
        %v560 = vld [vmem:[%s559] sm:$0xff]
        %v561 = vld [vmem:[%s559 + $0x8] sm:$0xff]
        %vm562 = vsmask.f32 7424
        %v563 = vshrl.u32 %v424, 16
        %v565 = vshll.u32 %v424, 16
        %v567 = vrot.slane %v565, 1
        %v568 = vor.u32 %v563, %v567
        %v570 = vshll.u32 %v558, 16
        %v572 = vrot.slane %v570, 1
        %v573 = vsel %vm562, %v568, %v572
        %v576 = vunpack.c.l.b16 %v560
        %v577 = vunpack.c.h.b16 %v560
        %v578 = vunpack.c.l.b16 %v561
        %v579 = vunpack.c.h.b16 %v561
        %v580 = vpack.c.b16 %v578, %v576
        %v581 = vpack.c.b16 %v579, %v577
        %v585 = vsel %vm435, %v573, 0
        %587 = vmatprep.subr.bf16.mxu0 0
        %588 = vmatpush1.bf16.msra.mxu0 0
        %589 = vmatprep.subr.bf16.mxu0 0
        %590 = vmatpush1.bf16.msra.mxu0 0
        %591 = vmatprep.subr.bf16.mxu0 0
        %592 = vmatpush1.bf16.msra.mxu0 0
        %593 = vmatprep.subr.bf16.mxu0 0
        %594 = vmatpush1.bf16.msra.mxu0 0
        %595 = vmatprep.subr.bf16.mxu0 0
        %596 = vmatpush1.bf16.msra.mxu0 0
        %597 = vmatprep.subr.bf16.mxu0 0
        %598 = vmatpush1.bf16.msra.mxu0 0
        %599 = vmatprep.subr.bf16.mxu0 0
        %600 = vmatpush1.bf16.msra.mxu0 0
        %601 = vmatprep.subr.bf16.mxu0 %v581
        %602 = vmatpush1.bf16.msra.mxu0 %v580
        %603 = vmatprep.subr.bf16.mxu0 0
        %604 = vmatpush2.bf16.msra.mxu0 0
        %605 = vmatprep.subr.bf16.mxu0 0
        %606 = vmatpush2.bf16.msra.mxu0 0
        %607 = vmatprep.subr.bf16.mxu0 0
        %608 = vmatpush2.bf16.msra.mxu0 0
        %609 = vmatprep.subr.bf16.mxu0 0
        %610 = vmatpush2.bf16.msra.mxu0 0
        %611 = vmatprep.subr.bf16.mxu0 0
        %612 = vmatpush2.bf16.msra.mxu0 0
        %613 = vmatprep.subr.bf16.mxu0 0
        %614 = vmatpush2.bf16.msra.mxu0 0
        %615 = vmatprep.subr.bf16.mxu0 0
        %616 = vmatpush2.bf16.msra.mxu0 0
        %617 = vmatprep.subr.bf16.mxu0 0
        %618 = vmatpush2.bf16.msra.mxu0 0
        %619 = vmatprep.mubr.bf16.mxu0 0
        %620 = vmatmul.mubr.bf16.gmra.mxu0 %v585
        %v621 = vpop.f32.mrf.mxu0
        %v622 = vadd.f32 0.0, %v621
        %v623 = vpop.f32.mrf.mxu0
        %v624 = vadd.f32 0.0, %v623
        %v625 = vpop.f32.mrf.mxu0
        %v626 = vadd.f32 0.0, %v625
        %v627 = vpop.f32.mrf.mxu0
        %v628 = vadd.f32 0.0, %v627
        %629 = vdwg.mxu0
        %v630 = vadd.f32 %v548, %v622
        %v631 = vadd.f32 %v549, %v624
        %v632 = vadd.f32 %v550, %v626
        %v633 = vadd.f32 %v551, %v628
        %v634 = vxor.u32 %v631, 2147483648
        %v635 = vxor.u32 %v633, 2147483648
        %v636 = vmul.f32 %v634, 1.442695
        %v637 = vpow.pop %v636
        %v638 = vmul.f32 %v635, 1.442695
        %v639 = vpow.pop %v638
        %v640 = vadd.f32 %v637, 1.0
        %v641 = vadd.f32 %v639, 1.0
        %v642 = vrcp.pop %v640
        %v643 = vmul.f32 1.0, %v642
        %v644 = vrcp.pop %v641
        %v645 = vmul.f32 1.0, %v644
        %v646 = vmul.f32 %v630, %v643
        %v647 = vmul.f32 %v632, %v645
        %v648 = vpack.c.bf16 %v647, %v646
        %v650 = vunpack.c.l.b16 %v648
        %v651 = vunpack.c.h.b16 %v648
        %v652 = vpack.c.b16 %v650, %v650
        %v653 = vpack.c.b16 %v651, %v651
        %656 = vst [vmem:[%s357] sm:$0xf] %v652
        %657 = vst [vmem:[%s357 + $0x4] sm:$0xf] %v653
        %s658 = sand.u32 %s200, 1
        %s659 = scalar_lea.sflag [#allocation3], %s658
        %s660 = sand.u32 %s200, 1
        %s661 = smul.addr %s660, 8
        %s662 = scalar_lea.vmem [#allocation2], %s661
        // Predicated region
        $region45: #{tpu_custom_call.1} parent=43 // pred_check
          %p663 = pneg %p210
        $region46: #{tpu_custom_call.1} parent=43 // pred_check_branch
          %665 = sbr.rel (%p663) target = $region48
        $region47: #{tpu_custom_call.1} parent=43 // pred_region
          %s666 = smul.u32 2, %s25
          %s668 = ssub.s32 128, 128
          %669 = vsyncadd %s659, %s668
          %s670 = smul.addr %s24, 2
          %s671 = sadd.s32 %s666, %s670
          %s672 = smul.addr %s671, 64
          %s673 = scalar_lea.hbm %s6, %s672
          %s674 = sshll.u32 %s662, 4
          %s675 = int_to_ptr.vmem [resolvable:$true] %s674
          %680 = dma.vmem_to_hbm [thread:$0]  %s675, 128, %s673, %s659, 64, 64, 4
        $region48: #{tpu_custom_call.1} parent=43 // pred_fallthru
          _
      $region44: #{tpu_custom_call.1} parent=5 // pred_fallthru
        _
      %p681 = scmp.le.s32.totalorder 2, %s15
      // Predicated region
      $region49: #{tpu_custom_call.1} parent=5 // pred_check
        %p682 = pneg %p681
      $region50: #{tpu_custom_call.1} parent=5 // pred_check_branch
        %684 = sbr.rel (%p682) target = $region52
      $region51: #{tpu_custom_call.1} parent=5 // pred_region
        %s685 = ssub.s32 %s15, 2
        // Predicated region
        $region53: #{tpu_custom_call.1} parent=51 // pred_check
          %p686 = pneg %p216
        $region54: #{tpu_custom_call.1} parent=51 // pred_check_branch
          %688 = sbr.rel (%p686) target = $region56
        $region55: #{tpu_custom_call.1} parent=51 // pred_region
          %s689 = sand.u32 %s201, 1
          %s690 = scalar_lea.sflag [#allocation3], %s689
          %s691 = sand.u32 %s201, 1
          %s692 = smul.addr %s691, 8
          %s693 = scalar_lea.vmem [#allocation2], %s692
          %694 = dma.done %s690, 128
        $region56: #{tpu_custom_call.1} parent=51 // pred_fallthru
          _
      $region52: #{tpu_custom_call.1} parent=5 // pred_fallthru
        _
    $region6: #{tpu_custom_call.1} parent=1 // loop_footer
      %s19 = sadd.s32 1, %s15
    $region7: #{tpu_custom_call.1} parent=1 // loop_footer_branch
      %14 = sbr.rel target = $region3
    $region8: #{tpu_custom_call.1} parent=1 // loop_exit
      _
    %695 = vsyncpa [#allocation3], 1
    %s696 = scalar_lea.sflag [#allocation3], 1
    %697 = vsyncpa %s696, 1

</llo_original>
